<compile_context>
chip_gen: v7x
topology: tpu7x:2x2x1
jax: 0.10.0
libtpu: 0.0.40
codegen_flags: <defaults>
</compile_context>

<pallas_src>
import functools

import jax
import jax.numpy as jnp
from jax import lax
from jax.experimental import pallas as pl
from jax.experimental.pallas import tpu as pltpu


def _batch_criterion_kernel(x_row_ref, x_col_ref, out_ref, div_acc, pos_acc,
                            *, inv_T, M, tm, tn, B):
    i = pl.program_id(0)          # row-block axis ("parallel")
    j = pl.program_id(1)          # col-block axis ("arbitrary", reduction)
    nj = pl.num_programs(1)
    half = B // 2

    @pl.when(j == 0)
    def _init():
        div_acc[...] = jnp.zeros_like(div_acc)
        pos_acc[...] = jnp.zeros_like(pos_acc)

    # Gram tile on the MXU in the stored (compute) dtype; f32 accumulation.
    # Transpose is folded into the contraction (no XLU copy, no operand upcast).
    sim = lax.dot_general(x_row_ref[...], x_col_ref[...],
                          dimension_numbers=(((1,), (1,)), ((), ())),
                          preferred_element_type=jnp.float32)     # (tm, tn) f32
    e = jnp.exp(sim * inv_T)                                       # EUP, f32

    row_start = i * tm
    col_start = j * tn
    # Cheap VPU iotas; they hide under the B^2 EUP exp cost.
    gr = lax.broadcasted_iota(jnp.int32, (tm, tn), 0) + row_start
    gc = lax.broadcasted_iota(jnp.int32, (tm, tn), 1) + col_start

    # ---- denominator: row-sums of exp(sim/T) with the diagonal removed -------
    touches_diag = jnp.logical_and(row_start < col_start + tn,
                                   col_start < row_start + tm)

    @pl.when(jnp.logical_not(touches_diag))
    def _off_diag_tile():
        div_acc[...] += e.sum(axis=1, keepdims=True)

    @pl.when(touches_diag)
    def _on_diag_tile():
        masked = jnp.where(gr == gc, jnp.float32(0.0), e)
        div_acc[...] += masked.sum(axis=1, keepdims=True)

    # ---- positive logits harvested from the Gram tile (shifted diagonal) -----
    # Row r's positive column is (r + B/2) mod B; it lands in exactly one
    # column block, so accumulating the select across j gives sim[r, pair(r)].
    ps = row_start + half

    def _overlaps(a_start):
        return jnp.logical_and(a_start < col_start + tn,
                               col_start < a_start + tm)

    touches_pos = jnp.logical_or(_overlaps(ps), _overlaps(ps - B))

    @pl.when(touches_pos)
    def _pos_tile():
        is_pos = jnp.logical_or(gc == gr + half, gc == gr - half)
        pos_acc[...] += jnp.sum(jnp.where(is_pos, sim, jnp.float32(0.0)),
                                axis=1, keepdims=True)

    # ---- finalize: ln(pos/all_div) without the exp/log round-trip ------------
    @pl.when(j == nj - 1)
    def _finalize():
        pos_logit = (pos_acc[...] - M) * inv_T
        out_ref[...] = pos_logit - jnp.log(div_acc[...])


# Conservative cross-generation VMEM budget (v7x has only 64 MiB physical,
# 32 MiB default scoped; v5e default scoped is 16 MiB — we raise it below).
_VMEM_BUDGET = 40 * 1024 * 1024


def _vmem_est(tm, tn, D, itemsize):
    """Rough VMEM bytes: double-buffered input blocks + f32 tile temporaries."""
    inputs = 2 * (tm + tn) * D * itemsize          # row + col blocks, 2-deep
    intermediates = 4 * tm * tn * 4                # sim / e / mask / select
    small = 6 * tm * 4                             # accumulators + output block
    return inputs + intermediates + small


def _pick_tiles(B, D, itemsize):
    """MXU-aligned row/col tiles dividing B, maximising tm, within VMEM budget."""
    tm_cands = [t for t in (512, 256, 128, 64, 32, 16, 8) if t <= B and B % t == 0]
    tn_cands = [t for t in (1024, 512, 256, 128, 64, 32, 16, 8) if t <= B and B % t == 0]
    if not tm_cands or not tn_cands:
        # TODO(synk): pad B to the next multiple of 256 with masked rows instead
        # of this slow single-tile fallback for awkward batch sizes.
        return B, B

    choices = []
    for tm in tm_cands:                      # largest tm first: fewest HBM passes
        for tn in tn_cands:                  # then largest tn that still fits
            if _vmem_est(tm, tn, D, itemsize) <= _VMEM_BUDGET:
                choices.append((tm, tn))
                break
    if not choices:
        return tm_cands[-1], tn_cands[-1]

    tm0, tn0 = choices[0]
    nrb0 = B // tm0
    # v7x megacore: if we already have multiple row blocks but an odd count,
    # accept at most one halving of tm to make it even.
    if nrb0 > 1 and nrb0 % 2 == 1:
        for tm, tn in choices[1:]:
            if (B // tm) % 2 == 0 and tm * 2 >= tm0:
                return tm, tn
    return tm0, tn0


def batch_criterion(x, targets=None, *, T, M, compute_dtype=jnp.bfloat16,
                    tile_override=None):
    """Pallas implementation of BatchCriterion.forward. Returns a scalar loss."""
    del targets  # unused by the reference forward pass
    B, D = x.shape
    if B % 2 != 0:
        raise ValueError("BatchCriterion requires an even batch size.")

    x_in = x if compute_dtype is None else x.astype(compute_dtype)
    itemsize = jnp.dtype(x_in.dtype).itemsize

    if tile_override is not None:
        tm, tn = tile_override
    else:
        tm, tn = _pick_tiles(B, D, itemsize)

    vmem_est = _vmem_est(tm, tn, D, itemsize)
    vmem_limit = int(min(56 << 20, max(32 << 20, 2 * vmem_est)))

    col_spec = pl.BlockSpec((tn, D), lambda i, j: (j, 0))
    # For small D the per-tile compute is short; a 3-deep column buffer hides the
    # DMA if (and only if) the extra buffer still fits the cross-gen VMEM budget.
    if (D <= 64 and (B // tn) >= 2
            and vmem_est + tn * D * itemsize <= _VMEM_BUDGET):
        col_spec = pl.BlockSpec((tn, D), lambda i, j: (j, 0),
                                pipeline_mode=pl.Buffered(3))

    kernel = functools.partial(
        _batch_criterion_kernel,
        inv_T=float(1.0 / T), M=float(M), tm=tm, tn=tn, B=B)

    ln_pmt = pl.pallas_call(
        kernel,
        out_shape=jax.ShapeDtypeStruct((B, 1), jnp.float32),
        grid_spec=pltpu.PrefetchScalarGridSpec(
            num_scalar_prefetch=0,
            grid=(B // tm, B // tn),
            in_specs=[
                pl.BlockSpec((tm, D), lambda i, j: (i, 0)),   # row block of x
                col_spec,                                     # column block of x
            ],
            out_specs=pl.BlockSpec((tm, 1), lambda i, j: (i, 0)),
            scratch_shapes=[pltpu.VMEM((tm, 1), jnp.float32),   # div accumulator
                            pltpu.VMEM((tm, 1), jnp.float32)],  # pos accumulator
        ),
        compiler_params=pltpu.CompilerParams(
            dimension_semantics=("parallel", "arbitrary"),
            vmem_limit_bytes=vmem_limit),
        cost_estimate=pl.CostEstimate(
            flops=2 * B * B * D,
            transcendentals=B * B + B,
            # column blocks are re-streamed once per row block + row blocks once.
            bytes_accessed=(B // tm) * B * D * itemsize + B * D * itemsize + B * 4),
    )(x_in, x_in)

    return -jnp.sum(ln_pmt) / B


def _reference(x, T, M):
    B = x.shape[0]
    xr = jnp.concatenate([x[B // 2:], x[: B // 2]], axis=0)
    pos = jnp.exp(((x * xr).sum(1) - M) / T)
    all_prob = jnp.exp(x @ x.T / T) * (1.0 - jnp.eye(B, dtype=x.dtype))
    all_div = all_prob.sum(1)
    return -jnp.sum(jnp.log(pos / all_div)) / B


if __name__ == "__main__":
    T, M = 0.07, 0.5
    key = jax.random.PRNGKey(0)
    k1, k2, k3 = jax.random.split(key, 3)

    def _norm(v):
        return v / jnp.linalg.norm(v, axis=1, keepdims=True)

    # Case 1 (primary, small): B=8, D=32, exact f32 path, single Gram tile.
    B, D = 8, 32
    x = _norm(jax.random.normal(k1, (B, D), dtype=jnp.float32))
    targets = jnp.arange(B, dtype=jnp.int32)               # unused, API parity
    loss = batch_criterion(x, targets, T=T, M=M, compute_dtype=None)
    jax.block_until_ready(loss)
    ref = _reference(x, T, M)
    assert jnp.allclose(loss, ref, rtol=1e-4, atol=1e-4), (loss, ref)

    # Case 2: default bf16 MXU path, 2x2 grid -> accumulator init/finalize,
    # diag-tile, off-diag-tile and Gram-harvested positive paths.
    B2, D2 = 32, 128
    x2 = _norm(jax.random.normal(k2, (B2, D2), dtype=jnp.float32))
    loss2 = batch_criterion(x2, None, T=T, M=M, tile_override=(16, 16))
    jax.block_until_ready(loss2)
    ref2 = _reference(x2.astype(jnp.bfloat16).astype(jnp.float32), T, M)
    assert jnp.allclose(loss2, ref2, rtol=2e-3, atol=2e-3), (loss2, ref2)

    # Case 3: bf16, small-D column stream -> exercises Buffered(3) pipelining
    # over 4 column blocks and 2 row blocks.
    B3, D3 = 64, 32
    x3 = _norm(jax.random.normal(k3, (B3, D3), dtype=jnp.float32))
    loss3 = batch_criterion(x3, None, T=T, M=M, tile_override=(32, 16))
    jax.block_until_ready(loss3)
    ref3 = _reference(x3.astype(jnp.bfloat16).astype(jnp.float32), T, M)
    assert jnp.allclose(loss3, ref3, rtol=2e-3, atol=2e-3), (loss3, ref3)

    print("KERNEL_OK")
</pallas_src>

<mosaic_0001>
module attributes {stable_mosaic.version = 11 : i64} {
  func.func @_batch_criterion_kernel(%arg0: i32, %arg1: i32, %arg2: memref<8x32xf32, #tpu.memory_space<vmem>>, %arg3: memref<8x32xf32, #tpu.memory_space<vmem>>, %arg4: memref<8x1xf32, #tpu.memory_space<vmem>>, %arg5: memref<8x1xf32, #tpu.memory_space<vmem>>, %arg6: memref<8x1xf32, #tpu.memory_space<vmem>>) attributes {dimension_semantics = [#tpu.dimension_semantics<parallel>, #tpu.dimension_semantics<arbitrary>], iteration_bounds = array<i64: 1, 1>, scalar_prefetch = 0 : i64, scratch_operands = 2 : i64, tpu.core_type = #tpu.core_type<tc>, window_params = [{transform_indices = @transform_0, window_bounds = array<i64: 8, 32>}, {transform_indices = @transform_1, window_bounds = array<i64: 8, 32>}, {transform_indices = @transform_2, window_bounds = array<i64: 8, 1>}]} {
    %c0_i32 = arith.constant 0 : i32
    %0 = arith.cmpi eq, %arg1, %c0_i32 : i32
    %1 = arith.extui %0 : i1 to i32
    %c0_i32_0 = arith.constant 0 : i32
    %2 = arith.cmpi ne, %1, %c0_i32_0 : i32
    scf.if %2 {
      %cst_18 = arith.constant 0.000000e+00 : f32
      %45 = vector.broadcast %cst_18 : f32 to vector<8x1xf32>
      %c0_19 = arith.constant 0 : index
      %c0_20 = arith.constant 0 : index
      %46 = vector.load %arg5[%c0_19, %c0_20] : memref<8x1xf32, #tpu.memory_space<vmem>>, vector<8x1xf32>
      tpu.vector_store %arg5[%c0_19, %c0_20], %45 {strides = array<i32>} : memref<8x1xf32, #tpu.memory_space<vmem>>, vector<8x1xf32>,
      %cst_21 = arith.constant 0.000000e+00 : f32
      %47 = vector.broadcast %cst_21 : f32 to vector<8x1xf32>
      %c0_22 = arith.constant 0 : index
      %c0_23 = arith.constant 0 : index
      %48 = vector.load %arg6[%c0_22, %c0_23] : memref<8x1xf32, #tpu.memory_space<vmem>>, vector<8x1xf32>
      tpu.vector_store %arg6[%c0_22, %c0_23], %47 {strides = array<i32>} : memref<8x1xf32, #tpu.memory_space<vmem>>, vector<8x1xf32>,
    } else {
    }
    %c0 = arith.constant 0 : index
    %c0_1 = arith.constant 0 : index
    %3 = vector.load %arg2[%c0, %c0_1] : memref<8x32xf32, #tpu.memory_space<vmem>>, vector<8x32xf32>
    %c0_2 = arith.constant 0 : index
    %c0_3 = arith.constant 0 : index
    %4 = vector.load %arg3[%c0_2, %c0_3] : memref<8x32xf32, #tpu.memory_space<vmem>>, vector<8x32xf32>
    %cst = arith.constant dense<0.000000e+00> : vector<8x8xf32>
    %5 = tpu.matmul %3, %4, %cst {dimension_numbers = #tpu.dot_dimension_numbers<[1], [1], [0], [0], [0, 0, 1, 0], [], []>} : vector<8x32xf32>, vector<8x32xf32>, vector<8x8xf32> -> vector<8x8xf32>
    %cst_4 = arith.constant 14.2857141 : f32
    %6 = vector.broadcast %cst_4 : f32 to vector<8x8xf32>
    %7 = arith.mulf %5, %6 : vector<8x8xf32>
    %8 = math.exp %7 : vector<8x8xf32>
    %c8_i32 = arith.constant 8 : i32
    %9 = arith.muli %arg0, %c8_i32 : i32
    %c8_i32_5 = arith.constant 8 : i32
    %10 = arith.muli %arg1, %c8_i32_5 : i32
    %11 = tpu.iota {dimensions = array<i32: 0>} : vector<8x8xi32>
    %12 = vector.broadcast %9 : i32 to vector<8x8xi32>
    %13 = arith.addi %11, %12 : vector<8x8xi32>
    %14 = tpu.iota {dimensions = array<i32: 1>} : vector<8x8xi32>
    %15 = vector.broadcast %10 : i32 to vector<8x8xi32>
    %16 = arith.addi %14, %15 : vector<8x8xi32>
    %c8_i32_6 = arith.constant 8 : i32
    %17 = arith.addi %10, %c8_i32_6 : i32
    %18 = arith.cmpi slt, %9, %17 : i32
    %c8_i32_7 = arith.constant 8 : i32
    %19 = arith.addi %9, %c8_i32_7 : i32
    %20 = arith.cmpi slt, %10, %19 : i32
    %21 = arith.andi %18, %20 : i1
    %true = arith.constant true
    %22 = arith.xori %21, %true : i1
    %23 = arith.extui %22 : i1 to i32
    %c0_i32_8 = arith.constant 0 : i32
    %24 = arith.cmpi ne, %23, %c0_i32_8 : i32
    scf.if %24 {
      %c0_18 = arith.constant 0 : index
      %c0_19 = arith.constant 0 : index
      %45 = vector.load %arg5[%c0_18, %c0_19] : memref<8x1xf32, #tpu.memory_space<vmem>>, vector<8x1xf32>
      %cst_20 = arith.constant dense<0.000000e+00> : vector<8xf32>
      %46 = vector.multi_reduction <add>, %8, %cst_20 [1] : vector<8x8xf32> to vector<8xf32>
      %47 = vector.shape_cast %46 : vector<8xf32> to vector<8x1xf32>
      %48 = arith.addf %45, %47 : vector<8x1xf32>
      %c0_21 = arith.constant 0 : index
      %c0_22 = arith.constant 0 : index
      %49 = vector.load %arg5[%c0_21, %c0_22] : memref<8x1xf32, #tpu.memory_space<vmem>>, vector<8x1xf32>
      tpu.vector_store %arg5[%c0_21, %c0_22], %48 {strides = array<i32>} : memref<8x1xf32, #tpu.memory_space<vmem>>, vector<8x1xf32>,
    } else {
    }
    %25 = arith.extui %21 : i1 to i32
    %c0_i32_9 = arith.constant 0 : i32
    %26 = arith.cmpi ne, %25, %c0_i32_9 : i32
    scf.if %26 {
      %45 = arith.cmpi eq, %13, %16 : vector<8x8xi32>
      %cst_18 = arith.constant 0.000000e+00 : f32
      %46 = vector.broadcast %cst_18 : f32 to vector<8x8xf32>
      %47 = arith.select %45, %46, %8 : vector<8x8xi1>, vector<8x8xf32>
      %c0_19 = arith.constant 0 : index
      %c0_20 = arith.constant 0 : index
      %48 = vector.load %arg5[%c0_19, %c0_20] : memref<8x1xf32, #tpu.memory_space<vmem>>, vector<8x1xf32>
      %cst_21 = arith.constant dense<0.000000e+00> : vector<8xf32>
      %49 = vector.multi_reduction <add>, %47, %cst_21 [1] : vector<8x8xf32> to vector<8xf32>
      %50 = vector.shape_cast %49 : vector<8xf32> to vector<8x1xf32>
      %51 = arith.addf %48, %50 : vector<8x1xf32>
      %c0_22 = arith.constant 0 : index
      %c0_23 = arith.constant 0 : index
      %52 = vector.load %arg5[%c0_22, %c0_23] : memref<8x1xf32, #tpu.memory_space<vmem>>, vector<8x1xf32>
      tpu.vector_store %arg5[%c0_22, %c0_23], %51 {strides = array<i32>} : memref<8x1xf32, #tpu.memory_space<vmem>>, vector<8x1xf32>,
    } else {
    }
    %c4_i32 = arith.constant 4 : i32
    %27 = arith.addi %9, %c4_i32 : i32
    %c8_i32_10 = arith.constant 8 : i32
    %28 = arith.addi %10, %c8_i32_10 : i32
    %29 = arith.cmpi slt, %27, %28 : i32
    %c8_i32_11 = arith.constant 8 : i32
    %30 = arith.addi %27, %c8_i32_11 : i32
    %31 = arith.cmpi slt, %10, %30 : i32
    %32 = arith.andi %29, %31 : i1
    %c8_i32_12 = arith.constant 8 : i32
    %33 = arith.subi %27, %c8_i32_12 : i32
    %c8_i32_13 = arith.constant 8 : i32
    %34 = arith.addi %10, %c8_i32_13 : i32
    %35 = arith.cmpi slt, %33, %34 : i32
    %c8_i32_14 = arith.constant 8 : i32
    %36 = arith.addi %33, %c8_i32_14 : i32
    %37 = arith.cmpi slt, %10, %36 : i32
    %38 = arith.andi %35, %37 : i1
    %39 = arith.ori %32, %38 : i1
    %40 = arith.extui %39 : i1 to i32
    %c0_i32_15 = arith.constant 0 : i32
    %41 = arith.cmpi ne, %40, %c0_i32_15 : i32
    scf.if %41 {
      %c4_i32_18 = arith.constant 4 : i32
      %45 = vector.broadcast %c4_i32_18 : i32 to vector<8x8xi32>
      %46 = arith.addi %13, %45 : vector<8x8xi32>
      %47 = arith.cmpi eq, %16, %46 : vector<8x8xi32>
      %c4_i32_19 = arith.constant 4 : i32
      %48 = vector.broadcast %c4_i32_19 : i32 to vector<8x8xi32>
      %49 = arith.subi %13, %48 : vector<8x8xi32>
      %50 = arith.cmpi eq, %16, %49 : vector<8x8xi32>
      %51 = arith.ori %47, %50 : vector<8x8xi1>
      %c0_20 = arith.constant 0 : index
      %c0_21 = arith.constant 0 : index
      %52 = vector.load %arg6[%c0_20, %c0_21] : memref<8x1xf32, #tpu.memory_space<vmem>>, vector<8x1xf32>
      %cst_22 = arith.constant 0.000000e+00 : f32
      %53 = vector.broadcast %cst_22 : f32 to vector<8x8xf32>
      %54 = arith.select %51, %5, %53 : vector<8x8xi1>, vector<8x8xf32>
      %cst_23 = arith.constant dense<0.000000e+00> : vector<8xf32>
      %55 = vector.multi_reduction <add>, %54, %cst_23 [1] : vector<8x8xf32> to vector<8xf32>
      %56 = vector.shape_cast %55 : vector<8xf32> to vector<8x1xf32>
      %57 = arith.addf %52, %56 : vector<8x1xf32>
      %c0_24 = arith.constant 0 : index
      %c0_25 = arith.constant 0 : index
      %58 = vector.load %arg6[%c0_24, %c0_25] : memref<8x1xf32, #tpu.memory_space<vmem>>, vector<8x1xf32>
      tpu.vector_store %arg6[%c0_24, %c0_25], %57 {strides = array<i32>} : memref<8x1xf32, #tpu.memory_space<vmem>>, vector<8x1xf32>,
    } else {
    }
    %c0_i32_16 = arith.constant 0 : i32
    %42 = arith.cmpi eq, %arg1, %c0_i32_16 : i32
    %43 = arith.extui %42 : i1 to i32
    %c0_i32_17 = arith.constant 0 : i32
    %44 = arith.cmpi ne, %43, %c0_i32_17 : i32
    scf.if %44 {
      %c0_18 = arith.constant 0 : index
      %c0_19 = arith.constant 0 : index
      %45 = vector.load %arg6[%c0_18, %c0_19] : memref<8x1xf32, #tpu.memory_space<vmem>>, vector<8x1xf32>
      %cst_20 = arith.constant 5.000000e-01 : f32
      %46 = vector.broadcast %cst_20 : f32 to vector<8x1xf32>
      %47 = arith.subf %45, %46 : vector<8x1xf32>
      %cst_21 = arith.constant 14.2857141 : f32
      %48 = vector.broadcast %cst_21 : f32 to vector<8x1xf32>
      %49 = arith.mulf %47, %48 : vector<8x1xf32>
      %c0_22 = arith.constant 0 : index
      %c0_23 = arith.constant 0 : index
      %50 = vector.load %arg5[%c0_22, %c0_23] : memref<8x1xf32, #tpu.memory_space<vmem>>, vector<8x1xf32>
      %51 = math.log %50 : vector<8x1xf32>
      %52 = arith.subf %49, %51 : vector<8x1xf32>
      %c0_24 = arith.constant 0 : index
      %c0_25 = arith.constant 0 : index
      %53 = vector.load %arg4[%c0_24, %c0_25] : memref<8x1xf32, #tpu.memory_space<vmem>>, vector<8x1xf32>
      tpu.vector_store %arg4[%c0_24, %c0_25], %52 {strides = array<i32>} : memref<8x1xf32, #tpu.memory_space<vmem>>, vector<8x1xf32>,
    } else {
    }
    return
  }
  func.func @transform_0(%arg0: i32, %arg1: i32) -> (i32, i32) {
    %c0_i32 = arith.constant 0 : i32
    %c0_i32_0 = arith.constant 0 : i32
    return %arg0, %c0_i32 : i32, i32
  }
  func.func @transform_1(%arg0: i32, %arg1: i32) -> (i32, i32) {
    %c0_i32 = arith.constant 0 : i32
    %c0_i32_0 = arith.constant 0 : i32
    return %arg1, %c0_i32 : i32, i32
  }
  func.func @transform_2(%arg0: i32, %arg1: i32) -> (i32, i32) {
    %c0_i32 = arith.constant 0 : i32
    %c0_i32_0 = arith.constant 0 : i32
    return %arg0, %c0_i32 : i32, i32
  }
}

</mosaic_0001>

<llo_original>
// kernel: tpu_custom_call.1
$region0: #{tpu_custom_call.1}
  #allocation0 [shape = 'u32[]', space=smem, size = 0x4, offset = 0x4, fixed_abs, tag = 'smem constant byte address 0x4 - core index']
  #allocation1 [shape = 'u32[144,128]{1,0:T(1,128)}', space=vmem, size = 0x12000, scoped, tag = 'internal scratch']
  #allocation2 [shape = 'f32[8,1]{1,0:T(8,128)}', space=vmem, size = 0x1000, scoped, tag = 'scratch operand']
  #allocation3 [shape = 'f32[8,1]{1,0:T(8,128)}', space=vmem, size = 0x1000, scoped, tag = 'scratch operand']
  %s0 = inlined_call_operand.hbm [shape: f32[8,32], index: 0, kind: input, shape index: {}]
  %s1 = inlined_call_operand.hbm [shape: f32[8,32], index: 1, kind: input, shape index: {}]
  %s2 = inlined_call_operand.vmem [shape: f32[8,1], index: 2, kind: output, shape index: {}]
  %s3 = sld [smem:[#allocation0]]
  $region46: #{tpu_custom_call.1} parent=0
    _
  %s5 = ssub.s32 1, %s3
  %s6 = scalar_select 0, %s5, %s3
  $region1: #{tpu_custom_call.1} parent=0
    #allocation4 [shape = 'u8[4096]{0}', space=vmem, size = 0x1000, scoped, tag = 'input window, operand 0, single buffered']
    #allocation5 [shape = 's32[1]{0}', space=sflag, size = 0x4, scoped, tag = 'scoped memory for tpu_custom_call.1']
    #allocation6 [shape = 'u8[4096]{0}', space=vmem, size = 0x1000, scoped, tag = 'input window, operand 1, single buffered']
    #allocation7 [shape = 's32[1]{0}', space=sflag, size = 0x4, scoped, tag = 'scoped memory for tpu_custom_call.1']
    %7 = vsyncpa [#allocation5], 0
    %8 = vsyncpa [#allocation7], 0
    // Predicated region
    $region2: #{tpu_custom_call.1} parent=1 // pred_check
      _
    $region3: #{tpu_custom_call.1} parent=1 // pred_check_branch
      %10 = sbr.rel (0) target = $region5
    $region4: #{tpu_custom_call.1} parent=1 // pred_region
      %s12 = ssub.s32 128, 128
      %13 = vsyncadd [#allocation5], %s12
      %s15 = sshll.u32 [#allocation4], 4
      %s16 = int_to_ptr.vmem [resolvable:$true] %s15
      %18 = dma.hbm_to_vmem [thread:$0]  %s0, 128, %s16, [#allocation5]
    $region5: #{tpu_custom_call.1} parent=1 // pred_fallthru
      _
    // Predicated region
    $region6: #{tpu_custom_call.1} parent=1 // pred_check
      _
    $region7: #{tpu_custom_call.1} parent=1 // pred_check_branch
      %20 = sbr.rel (0) target = $region9
    $region8: #{tpu_custom_call.1} parent=1 // pred_region
      %s22 = ssub.s32 128, 128
      %23 = vsyncadd [#allocation7], %s22
      %s25 = sshll.u32 [#allocation6], 4
      %s26 = int_to_ptr.vmem [resolvable:$true] %s25
      %28 = dma.hbm_to_vmem [thread:$0]  %s1, 128, %s26, [#allocation7]
    $region9: #{tpu_custom_call.1} parent=1 // pred_fallthru
      _
    // Predicated region
    $region10: #{tpu_custom_call.1} parent=1 // pred_check
      _
    $region11: #{tpu_custom_call.1} parent=1 // pred_check_branch
      %30 = sbr.rel (0) target = $region13
    $region12: #{tpu_custom_call.1} parent=1 // pred_region
      %31 = dma.done [#allocation5], 128
    $region13: #{tpu_custom_call.1} parent=1 // pred_fallthru
      _
    // Predicated region
    $region14: #{tpu_custom_call.1} parent=1 // pred_check
      _
    $region15: #{tpu_custom_call.1} parent=1 // pred_check_branch
      %33 = sbr.rel (0) target = $region17
    $region16: #{tpu_custom_call.1} parent=1 // pred_region
      %34 = dma.done [#allocation7], 128
    $region17: #{tpu_custom_call.1} parent=1 // pred_fallthru
      _
    %p35 = scmp.eq.s32.totalorder 0, 0
    // Predicated region
    $region18: #{tpu_custom_call.1} parent=1 // pred_check
      %p36 = pneg %p35
    $region19: #{tpu_custom_call.1} parent=1 // pred_check_branch
      %38 = sbr.rel (%p36) target = $region21
    $region20: #{tpu_custom_call.1} parent=1 // pred_region
      %vm39 = vcmask 7168
      %40 = vst.msk [vmem:[#allocation2] sm:$0xff] %vm39, 0.0
      %41 = vst.msk [vmem:[#allocation3] sm:$0xff] %vm39, 0.0
    $region21: #{tpu_custom_call.1} parent=1 // pred_fallthru
      _
    %v42 = vld [vmem:[#allocation4] sm:$0xff]
    %v43 = vld [vmem:[#allocation6] sm:$0xff]
    %vm44 = vcmask 261120
    %v46 = vsel %vm44, %v42, 0
    %v49 = vsel %vm44, %v43, 0
    %51 = vmatprep.subr.mxu0 0.0
    %52 = vmatpush1.xpose.msra.mxu0 %v49
    %53 = vmatprep.subr.mxu0 0.0
    %54 = vmatpush1.xpose.msra.mxu0 0.0
    %55 = vmatprep.subr.mxu0 0.0
    %56 = vmatpush1.xpose.msra.mxu0 0.0
    %57 = vmatprep.subr.mxu0 0.0
    %58 = vmatpush1.xpose.msra.mxu0 0.0
    %59 = vmatprep.subr.mxu0 0.0
    %60 = vmatpush1.xpose.msra.mxu0 0.0
    %61 = vmatprep.subr.mxu0 0.0
    %62 = vmatpush1.xpose.msra.mxu0 0.0
    %63 = vmatprep.subr.mxu0 0.0
    %64 = vmatpush1.xpose.msra.mxu0 0.0
    %65 = vmatprep.subr.mxu0 0.0
    %66 = vmatpush1.xpose.msra.mxu0 0.0
    %67 = vmatprep.subr.mxu0 0.0
    %68 = vmatpush1.xpose.msra.mxu0 0.0
    %69 = vmatprep.subr.mxu0 0.0
    %70 = vmatpush1.xpose.msra.mxu0 0.0
    %71 = vmatprep.subr.mxu0 0.0
    %72 = vmatpush1.xpose.msra.mxu0 0.0
    %73 = vmatprep.subr.mxu0 0.0
    %74 = vmatpush1.xpose.msra.mxu0 0.0
    %75 = vmatprep.subr.mxu0 0.0
    %76 = vmatpush1.xpose.msra.mxu0 0.0
    %77 = vmatprep.subr.mxu0 0.0
    %78 = vmatpush1.xpose.msra.mxu0 0.0
    %79 = vmatprep.subr.mxu0 0.0
    %80 = vmatpush1.xpose.msra.mxu0 0.0
    %81 = vmatprep.subr.mxu0 0.0
    %82 = vmatpush1.xpose.msra.mxu0 0.0
    %83 = vmatprep.subr.mxu0 0.0
    %84 = vmatpush1.xpose.msra.mxu0 0.0
    %85 = vmatprep.subr.mxu0 0.0
    %86 = vmatpush1.xpose.msra.mxu0 0.0
    %87 = vmatprep.subr.mxu0 0.0
    %88 = vmatpush1.xpose.msra.mxu0 0.0
    %89 = vmatprep.subr.mxu0 0.0
    %90 = vmatpush1.xpose.msra.mxu0 0.0
    %91 = vmatprep.subr.mxu0 0.0
    %92 = vmatpush1.xpose.msra.mxu0 0.0
    %93 = vmatprep.subr.mxu0 0.0
    %94 = vmatpush1.xpose.msra.mxu0 0.0
    %95 = vmatprep.subr.mxu0 0.0
    %96 = vmatpush1.xpose.msra.mxu0 0.0
    %97 = vmatprep.subr.mxu0 0.0
    %98 = vmatpush1.xpose.msra.mxu0 0.0
    %99 = vmatprep.subr.mxu0 0.0
    %100 = vmatpush1.xpose.msra.mxu0 0.0
    %101 = vmatprep.subr.mxu0 0.0
    %102 = vmatpush1.xpose.msra.mxu0 0.0
    %103 = vmatprep.subr.mxu0 0.0
    %104 = vmatpush1.xpose.msra.mxu0 0.0
    %105 = vmatprep.subr.mxu0 0.0
    %106 = vmatpush1.xpose.msra.mxu0 0.0
    %107 = vmatprep.subr.mxu0 0.0
    %108 = vmatpush1.xpose.msra.mxu0 0.0
    %109 = vmatprep.subr.mxu0 0.0
    %110 = vmatpush1.xpose.msra.mxu0 0.0
    %111 = vmatprep.subr.mxu0 0.0
    %112 = vmatpush1.xpose.msra.mxu0 0.0
    %113 = vmatprep.subr.mxu0 0.0
    %114 = vmatpush1.xpose.msra.mxu0 0.0
    %115 = vmatprep.mubr.f32.mxu0 0.0
    %116 = vmatmul.mubr.f32.gmra.mrb[0].mxu0 %v46
    %v117 = vpop.f32.mrb[0].mxu0
    %v118 = vadd.f32 0.0, %v117
    %v119 = vpop.f32.mrb[0].mxu0
    %120 = vdwg.mxu0
    %v121 = vmul.f32 %v118, 14.285714
    %v122 = vmul.f32 %v121, 1.442695
    %v123 = vpow.pop %v122
    %s124 = smul.u32 0, 8
    %s125 = smul.u32 0, 8
    %v126 = vlaneseq
    %v127 = vshrl.u32 %v126, 7
    %v128 = vstv %s124
    %v129 = vadd.s32 %v127, %v128
    %v130 = vlaneseq
    %v131 = vand.u32 %v130, 127
    %v132 = vstv %s125
    %v133 = vadd.s32 %v131, %v132
    %s134 = sadd.s32 %s125, 8
    %p135 = scmp.lt.s32.totalorder %s124, %s134
    %s136 = sadd.s32 %s124, 8
    %p137 = scmp.lt.s32.totalorder %s125, %s136
    %p138 = pnand %p135, %p137
    %p139 = pneg %p138
    // Predicated region
    $region22: #{tpu_custom_call.1} parent=1 // pred_check
      _
    $region23: #{tpu_custom_call.1} parent=1 // pred_check_branch
      %141 = sbr.rel (%p138) target = $region25
    $region24: #{tpu_custom_call.1} parent=1 // pred_region
      %vm142 = vcmp.eq.s32.totalorder %v129, %v133
      %v143 = vsel %vm142, 0.0, %v123
      %v144 = vld [vmem:[#allocation2] sm:$0xff]
      %vm145 = vcmask 64512
      %v146 = vsel %vm145, %v143, 0.0
      %147 = vadd.xlane.f32.xlu0 %v146
      %v148 = vpop.xlane.xlu0 %147
      %v149 = vadd.f32 %v144, %v148
      %vm150 = vcmask 7168
      %151 = vst.msk [vmem:[#allocation2] sm:$0xff] %vm150, %v149
    $region25: #{tpu_custom_call.1} parent=1 // pred_fallthru
      _
    // Predicated region
    $region26: #{tpu_custom_call.1} parent=1 // pred_check
      %p152 = pneg %p138
    $region27: #{tpu_custom_call.1} parent=1 // pred_check_branch
      %154 = sbr.rel (%p152) target = $region29
    $region28: #{tpu_custom_call.1} parent=1 // pred_region
      %v155 = vld [vmem:[#allocation2] sm:$0xff]
      %vm156 = vcmask 64512
      %v157 = vsel %vm156, %v123, 0.0
      %158 = vadd.xlane.f32.xlu0 %v157
      %v159 = vpop.xlane.xlu0 %158
      %v160 = vadd.f32 %v155, %v159
      %vm161 = vcmask 7168
      %162 = vst.msk [vmem:[#allocation2] sm:$0xff] %vm161, %v160
    $region29: #{tpu_custom_call.1} parent=1 // pred_fallthru
      _
    %s163 = sadd.s32 %s124, 4
    %p164 = scmp.lt.s32.totalorder %s163, %s134
    %s165 = sadd.s32 %s124, 12
    %p166 = scmp.lt.s32.totalorder %s125, %s165
    %p167 = pnand %p164, %p166
    %p168 = pneg %p167
    %s169 = sadd.s32 %s124, 4294967292
    %p170 = scmp.lt.s32.totalorder %s169, %s134
    %p171 = scmp.lt.s32.totalorder %s125, %s163
    %p172 = pnand %p170, %p171
    %p173 = pneg %p172
    %p174 = por %p168, %p173
    // Predicated region
    $region30: #{tpu_custom_call.1} parent=1 // pred_check
      %p175 = pneg %p174
    $region31: #{tpu_custom_call.1} parent=1 // pred_check_branch
      %177 = sbr.rel (%p175) target = $region33
    $region32: #{tpu_custom_call.1} parent=1 // pred_region
      %v178 = vadd.s32 %v129, 4
      %vm179 = vcmp.eq.s32.totalorder %v133, %v178
      %v180 = vsub.s32 %v129, 4
      %vm181 = vcmp.eq.s32.totalorder %v133, %v180
      %vm182 = vmor %vm179, %vm181
      %v183 = vld [vmem:[#allocation3] sm:$0xff]
      %v184 = vsel %vm182, %v118, 0.0
      %vm185 = vcmask 64512
      %v186 = vsel %vm185, %v184, 0.0
      %187 = vadd.xlane.f32.xlu0 %v186
      %v188 = vpop.xlane.xlu0 %187
      %v189 = vadd.f32 %v183, %v188
      %vm190 = vcmask 7168
      %191 = vst.msk [vmem:[#allocation3] sm:$0xff] %vm190, %v189
    $region33: #{tpu_custom_call.1} parent=1 // pred_fallthru
      _
    // Predicated region
    $region34: #{tpu_custom_call.1} parent=1 // pred_check
      %p192 = pneg %p35
    $region35: #{tpu_custom_call.1} parent=1 // pred_check_branch
      %194 = sbr.rel (%p192) target = $region37
    $region36: #{tpu_custom_call.1} parent=1 // pred_region
      %v195 = vld [vmem:[#allocation3] sm:$0xff]
      %v196 = vsub.f32 %v195, 0.5
      %v197 = vmul.f32 %v196, 14.285714
      %v198 = vld [vmem:[#allocation2] sm:$0xff]
      %v199 = vlog2.pop %v198
      %v200 = vmul.f32 %v199, 0.6931472
      %v201 = vsub.f32 %v197, %v200
      %vm202 = vcmask 7168
      %203 = vst.msk [vmem:[%s2] sm:$0xff] %vm202, %v201
    $region37: #{tpu_custom_call.1} parent=1 // pred_fallthru
      _
    // Predicated region
    $region38: #{tpu_custom_call.1} parent=1 // pred_check
      _
    $region39: #{tpu_custom_call.1} parent=1 // pred_check_branch
      %205 = sbr.rel (0) target = $region41
    $region40: #{tpu_custom_call.1} parent=1 // pred_region
      _
    $region41: #{tpu_custom_call.1} parent=1 // pred_fallthru
      _
    // Predicated region
    $region42: #{tpu_custom_call.1} parent=1 // pred_check
      _
    $region43: #{tpu_custom_call.1} parent=1 // pred_check_branch
      %207 = sbr.rel (0) target = $region45
    $region44: #{tpu_custom_call.1} parent=1 // pred_region
      _
    $region45: #{tpu_custom_call.1} parent=1 // pred_fallthru
      _
    %208 = vsyncpa [#allocation5], 1
    %209 = vsyncpa [#allocation7], 1

</llo_original>
